<compile_context>
chip_gen: v7x
topology: tpu7x:2x2x1
jax: 0.10.0
libtpu: 0.0.40
codegen_flags: <defaults>
</compile_context>

<pallas_src>
import functools

import jax
import jax.numpy as jnp
from jax.experimental import pallas as pl
from jax.experimental.pallas import tpu as pltpu

_MIB = 1024 * 1024


def _sigmoid(x):
    # exp hits the EUP slot; exact reciprocal keeps f32 accuracy on this
    # memory-bound kernel.
    return pl.reciprocal(1.0 + jnp.exp(-x))


# --------------------------------------------------------------------------- #
# Kernels
# --------------------------------------------------------------------------- #
def _fused_attention_kernel(x_ref, w1_ref, b1_ref, w2_ref, b2_ref,
                            w3_ref, b3_ref, w4_ref, b4_ref, o_ref):
    """One batch element per grid step; x_ref block is (1, C, HW)."""
    x = x_ref[0]                                                     # (C, HW) f32/bf16

    # ---- spatial gate: conv1x1(C->Cr) -> ReLU -> conv1x1(Cr->1) -> sigmoid
    h_s = jnp.dot(w1_ref[...], x, preferred_element_type=jnp.float32) + b1_ref[...]
    h_s = jnp.maximum(h_s, 0.0)                                      # (Cr, HW) f32
    # (1,Cr)@(Cr,HW) would be a degenerate MXU matmul -> VPU multiply + reduce.
    s = _sigmoid(jnp.sum(h_s * w2_ref[...], axis=0, keepdims=True) + b2_ref[0])

    # ---- channel gate: global avg pool -> conv1x1(C->Cr) -> ReLU -> conv1x1(Cr->C) -> sigmoid
    m = jnp.mean(x.astype(jnp.float32), axis=1, keepdims=True)       # (C, 1) f32 accum
    h_c = jnp.maximum(jnp.dot(w3_ref[...], m,
                              preferred_element_type=jnp.float32) + b3_ref[...], 0.0)
    c = _sigmoid(jnp.dot(w4_ref[...], h_c,
                         preferred_element_type=jnp.float32) + b4_ref[...])  # (C, 1)

    # ---- combine; HW on the lane axis -> lane-dense store
    o_ref[0] = (x * s * c).astype(o_ref.dtype)


def _spatial_combine_kernel(x_ref, w1_ref, b1_ref, w2_ref, b2_ref, c_ref, o_ref):
    """HW-tiled path: spatial gate + combine; channel gate c_ref precomputed.
    Purely per-column along HW -> a masked (partial) last tile is safe."""
    x = x_ref[0]                                                     # (C, T)
    h = jnp.dot(w1_ref[...], x, preferred_element_type=jnp.float32) + b1_ref[...]
    h = jnp.maximum(h, 0.0)                                          # (Cr, T)
    s = _sigmoid(jnp.sum(h * w2_ref[...], axis=0, keepdims=True) + b2_ref[0])
    o_ref[0] = (x * s * c_ref[0]).astype(o_ref.dtype)


# --------------------------------------------------------------------------- #
# Wrapper helpers
# --------------------------------------------------------------------------- #
def _full_spec(shape, n_grid_axes):
    zero = tuple(0 for _ in shape)
    if n_grid_axes == 1:
        return pl.BlockSpec(shape, lambda b: zero)
    return pl.BlockSpec(shape, lambda b, t: zero)


def _spec(shape, index_map, buffers=None):
    """BlockSpec with an optional pipeline depth (graceful fallback)."""
    if buffers is not None:
        try:
            return pl.BlockSpec(shape, index_map, pipeline_mode=pl.Buffered(buffers))
        except Exception:
            pass
    return pl.BlockSpec(shape, index_map)


def _cost_estimate(flops, transcendentals, bytes_accessed):
    try:
        return pl.CostEstimate(flops=int(flops),
                               transcendentals=int(transcendentals),
                               bytes_accessed=int(bytes_accessed))
    except Exception:
        return None


def _tpu_vmem_and_cores():
    """Physical VMEM bytes and TensorCore count (conservative fallbacks)."""
    phys = 64 * _MIB           # worst case across v5e/v6e/v7x
    cores = 1
    try:
        info = pltpu.get_tpu_info()
        phys = int(getattr(info, "vmem_capacity_bytes", phys))
        for name in ("num_cores", "num_tensorcores", "tensorcore_count",
                     "cores_per_chip", "num_cores_per_chip"):
            v = getattr(info, name, None)
            if isinstance(v, int) and v > 0:
                cores = v
                break
    except Exception:
        pass
    return phys, cores


def _pick_hw_tile(HW, C, x_isz, out_isz, w_bytes, budget, max_tile):
    """Largest lane-dense tile T (multiple of 128) whose full VMEM footprint
    (buffers + weights + channel gate) fits the budget.  No HW % T requirement:
    the grid uses cdiv(HW, T) with a masked last tile."""
    hw_pad = -(-HW // 128) * 128
    max_tile = max(128, min(max_tile, hw_pad))
    best = None
    for T in range(128, max_tile + 1, 128):
        nbuf_in = 3 if T <= 256 else 2              # deeper prefetch on small tiles
        need = (nbuf_in * C * T * x_isz + 2 * C * T * out_isz
                + 2 * w_bytes + 2 * C * 4 + 2 * _MIB)
        if need <= budget:
            best = T
    return best


def _kernel_params(params, x_dtype):
    """PyTorch Conv2d-layout params -> kernel layouts.  W1 follows x's dtype so
    a bf16 input takes the bf16 MXU path (f32 accumulation); gate math stays f32."""
    w1, b1, w2, b2, w3, b3, w4, b4 = params
    Cr, C = w1.shape
    w1_k = w1.astype(x_dtype) if x_dtype == jnp.bfloat16 else w1.astype(jnp.float32)
    return (w1_k,                                        # (Cr, C)
            b1.reshape(Cr, 1).astype(jnp.float32),
            w2.reshape(Cr, 1).astype(jnp.float32),       # (1, Cr) conv weight -> column
            b2.reshape(1).astype(jnp.float32),           # scalar bias -> SMEM
            w3.astype(jnp.float32),                      # (Cr, C)
            b3.reshape(Cr, 1).astype(jnp.float32),
            w4.astype(jnp.float32),                      # (C, Cr)
            b4.reshape(C, 1).astype(jnp.float32))


# --------------------------------------------------------------------------- #
# Public entry point
# --------------------------------------------------------------------------- #
@functools.partial(jax.jit, static_argnames=("force_path", "out_dtype"))
def attention_module_pallas(x_nchw, params, force_path=None, out_dtype=None):
    """AttentionModule.forward.  x_nchw: (B, C, H, W) -> (B, C, H, W).

    force_path: None (auto), "fused", or "tiled".
    out_dtype : e.g. jnp.bfloat16 to halve store-side HBM traffic.
    x may be f32 or bf16 (bf16 input halves read-side HBM traffic).
    """
    B, C, H, W = x_nchw.shape
    HW = H * W
    out_dtype = x_nchw.dtype if out_dtype is None else jnp.dtype(out_dtype)
    x_isz = jnp.dtype(x_nchw.dtype).itemsize
    out_isz = jnp.dtype(out_dtype).itemsize

    x = x_nchw.reshape(B, C, HW)                       # contiguous reshape: free
    w1, b1, w2c, b2, w3, b3, w4, b4 = _kernel_params(params, x_nchw.dtype)
    Cr = w1.shape[0]
    w_bytes = sum(int(a.size) * jnp.dtype(a.dtype).itemsize
                  for a in (w1, b1, w2c, w3, b3, w4, b4)) + 4

    phys_vmem, n_cores = _tpu_vmem_and_cores()
    vmem_cap = max(phys_vmem - 8 * _MIB, 32 * _MIB)     # never exceed physical VMEM
    budget = max(phys_vmem - 12 * _MIB, 24 * _MIB)      # planning budget

    # Whole-image blocks are single-buffered when B == 1 (nothing to prefetch).
    nbuf_img = 1 if B == 1 else 2
    fused_bytes = nbuf_img * C * HW * (x_isz + out_isz) + 2 * w_bytes
    fused_fits = fused_bytes + 2 * _MIB <= budget

    # When B is smaller than the TensorCore count, shard over HW instead so both
    # cores get work (v7x / megacore).
    prefer_tiled = (force_path == "tiled") or (B < n_cores and HW >= 256)
    use_fused = (force_path == "fused") or \
                (force_path is None and not prefer_tiled and fused_fits)

    flops = B * (2 * C * Cr * HW + 2 * Cr * HW + 3 * C * HW + 4 * C * Cr)
    transc = B * (HW + C)

    if use_fused:
        vmem_limit = int(min(max(fused_bytes + 4 * _MIB, 32 * _MIB), vmem_cap))
        img_buf = 1 if B == 1 else None
        out = pl.pallas_call(
            _fused_attention_kernel,
            out_shape=jax.ShapeDtypeStruct((B, C, HW), out_dtype),
            grid_spec=pltpu.PrefetchScalarGridSpec(
                num_scalar_prefetch=0,
                grid=(B,),
                in_specs=[
                    _spec((1, C, HW), lambda b: (b, 0, 0), buffers=img_buf),  # x
                    _full_spec(w1.shape, 1),                                  # W1
                    _full_spec(b1.shape, 1),                                  # b1
                    _full_spec(w2c.shape, 1),                                 # W2 col
                    pl.BlockSpec(memory_space=pltpu.MemorySpace.SMEM),        # b2
                    _full_spec(w3.shape, 1),                                  # W3
                    _full_spec(b3.shape, 1),                                  # b3
                    _full_spec(w4.shape, 1),                                  # W4
                    _full_spec(b4.shape, 1),                                  # b4
                ],
                out_specs=_spec((1, C, HW), lambda b: (b, 0, 0), buffers=img_buf),
            ),
            compiler_params=pltpu.CompilerParams(
                dimension_semantics=("parallel",),
                vmem_limit_bytes=vmem_limit),
            cost_estimate=_cost_estimate(
                flops, transc, B * C * HW * (x_isz + out_isz) + w_bytes),
        )(x, w1, b1, w2c, b2, w3, b3, w4, b4)
    else:
        # Channel gate hoisted to tiny (B, C) JAX math (one extra fused HBM read
        # of x), required when a whole image can't stay VMEM-resident or when
        # sharding HW across cores.
        m = jnp.mean(x, axis=2, dtype=jnp.float32)                    # (B, C)
        hc = jnp.maximum(m @ w3.T + b3[:, 0], 0.0)                    # (B, Cr)
        cg = jax.nn.sigmoid(hc @ w4.T + b4[:, 0]).reshape(B, C, 1)    # (B, C, 1)

        if force_path == "tiled" and HW >= 256:
            max_tile = max(128, ((HW // 2) // 128) * 128)   # exercise >=2 tiles in tests
        else:
            max_tile = 64 * 1024
        tile = _pick_hw_tile(HW, C, x_isz, out_isz, w_bytes, budget, max_tile)
        if tile is None:
            # TODO(synk): also tile over channels for extremely large C; for now
            # use the narrowest lane tile and let the compiler manage VMEM.
            tile = 128
        n_t = pl.cdiv(HW, tile)                              # masked last tile OK
        nbuf_in = 3 if (tile <= 256 and B * n_t >= 3) else None
        tiled_bytes = ((3 if tile <= 256 else 2) * C * tile * x_isz
                       + 2 * C * tile * out_isz + 2 * w_bytes + 2 * C * 4)
        vmem_limit = int(min(max(tiled_bytes + 4 * _MIB, 32 * _MIB), vmem_cap))
        out = pl.pallas_call(
            _spatial_combine_kernel,
            out_shape=jax.ShapeDtypeStruct((B, C, HW), out_dtype),
            grid_spec=pltpu.PrefetchScalarGridSpec(
                num_scalar_prefetch=0,
                grid=(B, n_t),
                in_specs=[
                    _spec((1, C, tile), lambda b, t: (b, 0, t), buffers=nbuf_in),
                    _full_spec(w1.shape, 2),
                    _full_spec(b1.shape, 2),
                    _full_spec(w2c.shape, 2),
                    pl.BlockSpec(memory_space=pltpu.MemorySpace.SMEM),   # b2 scalar
                    pl.BlockSpec((1, C, 1), lambda b, t: (b, 0, 0)),     # channel gate
                ],
                out_specs=pl.BlockSpec((1, C, tile), lambda b, t: (b, 0, t)),
            ),
            compiler_params=pltpu.CompilerParams(
                dimension_semantics=("parallel", "parallel"),
                vmem_limit_bytes=vmem_limit),
            cost_estimate=_cost_estimate(
                flops, transc,
                B * C * HW * (x_isz + out_isz) + B * C * 4 + w_bytes),
        )(x, w1, b1, w2c, b2, cg)

    return out.reshape(B, C, H, W)


# --------------------------------------------------------------------------- #
# Parameters (PyTorch Conv2d layout) and pure-JAX reference
# --------------------------------------------------------------------------- #
def init_params(key, in_channels):
    """Deterministic synthetic params, PyTorch Conv2d(out,in,1,1) layout."""
    C = in_channels
    Cr = C // 8
    ks = jax.random.split(key, 8)
    scale = 0.1
    w1 = scale * jax.random.normal(ks[0], (Cr, C), jnp.float32)   # spatial conv1
    b1 = scale * jax.random.normal(ks[1], (Cr,), jnp.float32)
    w2 = scale * jax.random.normal(ks[2], (1, Cr), jnp.float32)   # spatial conv2
    b2 = scale * jax.random.normal(ks[3], (1,), jnp.float32)
    w3 = scale * jax.random.normal(ks[4], (Cr, C), jnp.float32)   # channel conv1
    b3 = scale * jax.random.normal(ks[5], (Cr,), jnp.float32)
    w4 = scale * jax.random.normal(ks[6], (C, Cr), jnp.float32)   # channel conv2
    b4 = scale * jax.random.normal(ks[7], (C,), jnp.float32)
    return (w1, b1, w2, b2, w3, b3, w4, b4)


def attention_module_ref(x_nchw, params):
    """Pure-JAX reference mirroring the PyTorch forward (NCHW)."""
    w1, b1, w2, b2, w3, b3, w4, b4 = params
    B, C, H, W = x_nchw.shape
    xf = x_nchw.reshape(B, C, H * W)
    h = jax.nn.relu(jnp.einsum('rc,bcp->brp', w1, xf) + b1[None, :, None])
    s = jax.nn.sigmoid(jnp.einsum('or,brp->bop', w2, h) + b2[None, :, None])  # (B,1,HW)
    m = xf.mean(axis=2)                                                        # (B,C)
    hc = jax.nn.relu(m @ w3.T + b3)
    c = jax.nn.sigmoid(hc @ w4.T + b4)                                         # (B,C)
    return (xf * s * c[:, :, None]).reshape(B, C, H, W)


if __name__ == "__main__":
    key = jax.random.PRNGKey(0)
    k_x, k_p, k_x2, k_p2 = jax.random.split(key, 4)

    B, C, H, W = 2, 32, 16, 16          # in_channels=32 -> C//8 = 4
    x = jax.random.normal(k_x, (B, C, H, W), jnp.float32)
    params = init_params(k_p, C)
    ref = attention_module_ref(x, params)

    # Auto path: whole image fits VMEM -> fused single-pass kernel.
    out = jax.block_until_ready(attention_module_pallas(x, params))
    assert out.shape == (B, C, H, W)
    assert jnp.allclose(out, ref, atol=1e-4, rtol=1e-4), "fused path mismatch"

    # HW-tiled path (large images / multi-core sharding), >=2 tiles forced.
    out_t = jax.block_until_ready(attention_module_pallas(x, params, force_path="tiled"))
    assert jnp.allclose(out_t, ref, atol=1e-4, rtol=1e-4), "tiled path mismatch"

    # bf16 input + bf16 output (halves both read- and store-side HBM traffic).
    x_bf = x.astype(jnp.bfloat16)
    ref_bf = attention_module_ref(x_bf.astype(jnp.float32), params)
    out_bf = jax.block_until_ready(
        attention_module_pallas(x_bf, params, out_dtype=jnp.bfloat16))
    assert jnp.allclose(out_bf.astype(jnp.float32), ref_bf, atol=3e-2, rtol=3e-2), \
        "bf16 i/o mismatch"

    # Non-multiple-of-128 HW on the tiled path (masked partial last tile).
    B2, C2, H2, W2 = 1, 16, 16, 20       # HW = 320 -> tiles of 128, last partial
    x2 = jax.random.normal(k_x2, (B2, C2, H2, W2), jnp.float32)
    params2 = init_params(k_p2, C2)
    ref2 = attention_module_ref(x2, params2)
    out2 = jax.block_until_ready(
        attention_module_pallas(x2, params2, force_path="tiled"))
    assert jnp.allclose(out2, ref2, atol=1e-4, rtol=1e-4), "masked-tile mismatch"

    print("KERNEL_OK")
</pallas_src>

<mosaic_0001>
module attributes {stable_mosaic.version = 11 : i64} {
  func.func @_fused_attention_kernel(%arg0: i32, %arg1: memref<1x32x256xf32, #tpu.memory_space<vmem>>, %arg2: memref<4x32xf32, #tpu.memory_space<vmem>>, %arg3: memref<4x1xf32, #tpu.memory_space<vmem>>, %arg4: memref<4x1xf32, #tpu.memory_space<vmem>>, %arg5: memref<1xf32, #tpu.memory_space<smem>>, %arg6: memref<4x32xf32, #tpu.memory_space<vmem>>, %arg7: memref<4x1xf32, #tpu.memory_space<vmem>>, %arg8: memref<32x4xf32, #tpu.memory_space<vmem>>, %arg9: memref<32x1xf32, #tpu.memory_space<vmem>>, %arg10: memref<1x32x256xf32, #tpu.memory_space<vmem>>) attributes {dimension_semantics = [#tpu.dimension_semantics<parallel>], iteration_bounds = array<i64: 2>, scalar_prefetch = 0 : i64, scratch_operands = 0 : i64, tpu.core_type = #tpu.core_type<tc>, window_params = [{transform_indices = @transform_0, window_bounds = array<i64: 1, 32, 256>}, {pipeline_mode = #tpu.pipeline_mode<synchronous>, transform_indices = @transform_1, window_bounds = array<i64: 4, 32>}, {pipeline_mode = #tpu.pipeline_mode<synchronous>, transform_indices = @transform_2, window_bounds = array<i64: 4, 1>}, {pipeline_mode = #tpu.pipeline_mode<synchronous>, transform_indices = @transform_3, window_bounds = array<i64: 4, 1>}, {transform_indices = @transform_4, window_bounds = array<i64: 1>}, {pipeline_mode = #tpu.pipeline_mode<synchronous>, transform_indices = @transform_5, window_bounds = array<i64: 4, 32>}, {pipeline_mode = #tpu.pipeline_mode<synchronous>, transform_indices = @transform_6, window_bounds = array<i64: 4, 1>}, {pipeline_mode = #tpu.pipeline_mode<synchronous>, transform_indices = @transform_7, window_bounds = array<i64: 32, 4>}, {pipeline_mode = #tpu.pipeline_mode<synchronous>, transform_indices = @transform_8, window_bounds = array<i64: 32, 1>}, {transform_indices = @transform_9, window_bounds = array<i64: 1, 32, 256>}]} {
    %c0 = arith.constant 0 : index
    %c0_0 = arith.constant 0 : index
    %c0_1 = arith.constant 0 : index
    %0 = vector.load %arg1[%c0, %c0_0, %c0_1] : memref<1x32x256xf32, #tpu.memory_space<vmem>>, vector<1x32x256xf32>
    %1 = vector.shape_cast %0 : vector<1x32x256xf32> to vector<32x256xf32>
    %c0_2 = arith.constant 0 : index
    %c0_3 = arith.constant 0 : index
    %2 = vector.load %arg2[%c0_2, %c0_3] : memref<4x32xf32, #tpu.memory_space<vmem>>, vector<4x32xf32>
    %cst = arith.constant dense<0.000000e+00> : vector<4x256xf32>
    %3 = tpu.matmul %2, %1, %cst {dimension_numbers = #tpu.dot_dimension_numbers<[1], [0], [0], [1], [0, 0, 1, 1], [], []>} : vector<4x32xf32>, vector<32x256xf32>, vector<4x256xf32> -> vector<4x256xf32>
    %c0_4 = arith.constant 0 : index
    %c0_5 = arith.constant 0 : index
    %4 = vector.load %arg3[%c0_4, %c0_5] : memref<4x1xf32, #tpu.memory_space<vmem>>, vector<4x1xf32>
    %5 = vector.broadcast %4 : vector<4x1xf32> to vector<4x256xf32>
    %6 = arith.addf %3, %5 : vector<4x256xf32>
    %cst_6 = arith.constant 0.000000e+00 : f32
    %7 = vector.broadcast %cst_6 : f32 to vector<4x256xf32>
    %8 = arith.maximumf %6, %7 : vector<4x256xf32>
    %c0_7 = arith.constant 0 : index
    %c0_8 = arith.constant 0 : index
    %9 = vector.load %arg4[%c0_7, %c0_8] : memref<4x1xf32, #tpu.memory_space<vmem>>, vector<4x1xf32>
    %10 = vector.broadcast %9 : vector<4x1xf32> to vector<4x256xf32>
    %11 = arith.mulf %8, %10 : vector<4x256xf32>
    %cst_9 = arith.constant dense<0.000000e+00> : vector<256xf32>
    %12 = vector.multi_reduction <add>, %11, %cst_9 [0] : vector<4x256xf32> to vector<256xf32>
    %13 = vector.shape_cast %12 : vector<256xf32> to vector<1x256xf32>
    %c0_10 = arith.constant 0 : index
    %14 = memref.load %arg5[%c0_10] : memref<1xf32, #tpu.memory_space<smem>>
    %15 = vector.broadcast %14 : f32 to vector<1x256xf32>
    %16 = arith.addf %13, %15 : vector<1x256xf32>
    %cst_11 = arith.constant 0.000000e+00 : f32
    %17 = vector.broadcast %cst_11 : f32 to vector<1x256xf32>
    %18 = arith.subf %17, %16 : vector<1x256xf32>
    %19 = math.exp %18 : vector<1x256xf32>
    %cst_12 = arith.constant 1.000000e+00 : f32
    %20 = vector.broadcast %cst_12 : f32 to vector<1x256xf32>
    %21 = arith.addf %20, %19 : vector<1x256xf32>
    %22 = tpu.reciprocal %21 : vector<1x256xf32> -> vector<1x256xf32>
    %cst_13 = arith.constant dense<0.000000e+00> : vector<32xf32>
    %23 = vector.multi_reduction <add>, %1, %cst_13 [1] : vector<32x256xf32> to vector<32xf32>
    %24 = vector.shape_cast %23 : vector<32xf32> to vector<32x1xf32>
    %cst_14 = arith.constant 2.560000e+02 : f32
    %25 = vector.broadcast %cst_14 : f32 to vector<32x1xf32>
    %26 = arith.divf %24, %25 : vector<32x1xf32>
    %c0_15 = arith.constant 0 : index
    %c0_16 = arith.constant 0 : index
    %27 = vector.load %arg6[%c0_15, %c0_16] : memref<4x32xf32, #tpu.memory_space<vmem>>, vector<4x32xf32>
    %cst_17 = arith.constant dense<0.000000e+00> : vector<4x1xf32>
    %28 = tpu.matmul %27, %26, %cst_17 {dimension_numbers = #tpu.dot_dimension_numbers<[1], [0], [0], [1], [0, 0, 1, 1], [], []>} : vector<4x32xf32>, vector<32x1xf32>, vector<4x1xf32> -> vector<4x1xf32>
    %c0_18 = arith.constant 0 : index
    %c0_19 = arith.constant 0 : index
    %29 = vector.load %arg7[%c0_18, %c0_19] : memref<4x1xf32, #tpu.memory_space<vmem>>, vector<4x1xf32>
    %30 = arith.addf %28, %29 : vector<4x1xf32>
    %cst_20 = arith.constant 0.000000e+00 : f32
    %31 = vector.broadcast %cst_20 : f32 to vector<4x1xf32>
    %32 = arith.maximumf %30, %31 : vector<4x1xf32>
    %c0_21 = arith.constant 0 : index
    %c0_22 = arith.constant 0 : index
    %33 = vector.load %arg8[%c0_21, %c0_22] : memref<32x4xf32, #tpu.memory_space<vmem>>, vector<32x4xf32>
    %cst_23 = arith.constant dense<0.000000e+00> : vector<32x1xf32>
    %34 = tpu.matmul %33, %32, %cst_23 {dimension_numbers = #tpu.dot_dimension_numbers<[1], [0], [0], [1], [0, 0, 1, 1], [], []>} : vector<32x4xf32>, vector<4x1xf32>, vector<32x1xf32> -> vector<32x1xf32>
    %c0_24 = arith.constant 0 : index
    %c0_25 = arith.constant 0 : index
    %35 = vector.load %arg9[%c0_24, %c0_25] : memref<32x1xf32, #tpu.memory_space<vmem>>, vector<32x1xf32>
    %36 = arith.addf %34, %35 : vector<32x1xf32>
    %cst_26 = arith.constant 0.000000e+00 : f32
    %37 = vector.broadcast %cst_26 : f32 to vector<32x1xf32>
    %38 = arith.subf %37, %36 : vector<32x1xf32>
    %39 = math.exp %38 : vector<32x1xf32>
    %cst_27 = arith.constant 1.000000e+00 : f32
    %40 = vector.broadcast %cst_27 : f32 to vector<32x1xf32>
    %41 = arith.addf %40, %39 : vector<32x1xf32>
    %42 = tpu.reciprocal %41 : vector<32x1xf32> -> vector<32x1xf32>
    %43 = vector.broadcast %22 : vector<1x256xf32> to vector<32x256xf32>
    %44 = arith.mulf %1, %43 : vector<32x256xf32>
    %45 = vector.broadcast %42 : vector<32x1xf32> to vector<32x256xf32>
    %46 = arith.mulf %44, %45 : vector<32x256xf32>
    %c0_28 = arith.constant 0 : index
    %c0_29 = arith.constant 0 : index
    %c0_30 = arith.constant 0 : index
    %47 = vector.load %arg10[%c0_28, %c0_29, %c0_30] : memref<1x32x256xf32, #tpu.memory_space<vmem>>, vector<1x32x256xf32>
    %48 = vector.shape_cast %47 : vector<1x32x256xf32> to vector<32x256xf32>
    %49 = vector.shape_cast %46 : vector<32x256xf32> to vector<1x32x256xf32>
    tpu.vector_store %arg10[%c0_28, %c0_29, %c0_30], %49 {strides = array<i32>} : memref<1x32x256xf32, #tpu.memory_space<vmem>>, vector<1x32x256xf32>,
    return
  }
  func.func @transform_0(%arg0: i32) -> (i32, i32, i32) {
    %c0_i32 = arith.constant 0 : i32
    %c0_i32_0 = arith.constant 0 : i32
    %c0_i32_1 = arith.constant 0 : i32
    return %arg0, %c0_i32, %c0_i32_0 : i32, i32, i32
  }
  func.func @transform_1(%arg0: i32) -> (i32, i32) {
    %c0_i32 = arith.constant 0 : i32
    %c0_i32_0 = arith.constant 0 : i32
    %c0_i32_1 = arith.constant 0 : i32
    return %c0_i32, %c0_i32_0 : i32, i32
  }
  func.func @transform_2(%arg0: i32) -> (i32, i32) {
    %c0_i32 = arith.constant 0 : i32
    %c0_i32_0 = arith.constant 0 : i32
    %c0_i32_1 = arith.constant 0 : i32
    return %c0_i32, %c0_i32_0 : i32, i32
  }
  func.func @transform_3(%arg0: i32) -> (i32, i32) {
    %c0_i32 = arith.constant 0 : i32
    %c0_i32_0 = arith.constant 0 : i32
    %c0_i32_1 = arith.constant 0 : i32
    return %c0_i32, %c0_i32_0 : i32, i32
  }
  func.func @transform_4(%arg0: i32) -> i32 {
    %c0_i32 = arith.constant 0 : i32
    %c0_i32_0 = arith.constant 0 : i32
    return %c0_i32 : i32
  }
  func.func @transform_5(%arg0: i32) -> (i32, i32) {
    %c0_i32 = arith.constant 0 : i32
    %c0_i32_0 = arith.constant 0 : i32
    %c0_i32_1 = arith.constant 0 : i32
    return %c0_i32, %c0_i32_0 : i32, i32
  }
  func.func @transform_6(%arg0: i32) -> (i32, i32) {
    %c0_i32 = arith.constant 0 : i32
    %c0_i32_0 = arith.constant 0 : i32
    %c0_i32_1 = arith.constant 0 : i32
    return %c0_i32, %c0_i32_0 : i32, i32
  }
  func.func @transform_7(%arg0: i32) -> (i32, i32) {
    %c0_i32 = arith.constant 0 : i32
    %c0_i32_0 = arith.constant 0 : i32
    %c0_i32_1 = arith.constant 0 : i32
    return %c0_i32, %c0_i32_0 : i32, i32
  }
  func.func @transform_8(%arg0: i32) -> (i32, i32) {
    %c0_i32 = arith.constant 0 : i32
    %c0_i32_0 = arith.constant 0 : i32
    %c0_i32_1 = arith.constant 0 : i32
    return %c0_i32, %c0_i32_0 : i32, i32
  }
  func.func @transform_9(%arg0: i32) -> (i32, i32, i32) {
    %c0_i32 = arith.constant 0 : i32
    %c0_i32_0 = arith.constant 0 : i32
    %c0_i32_1 = arith.constant 0 : i32
    return %arg0, %c0_i32, %c0_i32_0 : i32, i32, i32
  }
}

</mosaic_0001>

<llo_original>
// kernel: attention_module_pallas.1
$region0: #{attention_module_pallas.1}
  #allocation0 [shape = 'u32[]', space=smem, size = 0x4, offset = 0x4, fixed_abs, tag = 'smem constant byte address 0x4 - core index']
  #allocation1 [shape = 'u32[144,128]{1,0:T(1,128)}', space=vmem, size = 0x12000, scoped, tag = 'internal scratch']
  #allocation2 [shape = 'f32[1]{0:T(128)S(6)}', space=smem, size = 0x200, scoped, tag = 'scoped memory for attention_module_pallas.1']
  %s0 = inlined_call_operand.vmem [shape: f32[2,32,256], index: 0, kind: input, shape index: {}]
  %s1 = inlined_call_operand.vmem [shape: f32[4,32], index: 1, kind: input, shape index: {}]
  %s2 = inlined_call_operand.vmem [shape: f32[4,1], index: 2, kind: input, shape index: {}]
  %s3 = inlined_call_operand.vmem [shape: f32[4,1], index: 3, kind: input, shape index: {}]
  %s4 = inlined_call_operand.<no memory space> [shape: f32[1], index: 4, kind: input, shape index: {}]
  %s5 = inlined_call_operand.vmem [shape: f32[4,32], index: 5, kind: input, shape index: {}]
  %s6 = inlined_call_operand.vmem [shape: f32[4,1], index: 6, kind: input, shape index: {}]
  %s7 = inlined_call_operand.vmem [shape: f32[32,4], index: 7, kind: input, shape index: {}]
  %s8 = inlined_call_operand.vmem [shape: f32[32,1], index: 8, kind: input, shape index: {}]
  %s9 = inlined_call_operand.vmem [shape: f32[2,32,256], index: 9, kind: output, shape index: {}]
  %s10 = sld [smem:[#allocation0]]
  $region69: #{attention_module_pallas.1} parent=0
    _
  %s12 = ssub.s32 1, %s10
  %s13 = scalar_select 0, %s12, %s10
  %14 = sst [smem:[#allocation2]] %s4
  loop: start=0, step=1, limit=4
  $region2: #{attention_module_pallas.1} parent=0 // loop_pre_header
    _
  $region3: #{attention_module_pallas.1} parent=0 // loop_header
    %s16 = sphi 0, %s20
    %p17 = scmp.ge.s32.totalorder %s16, 4
    %s26 = sphi 0, %s28
    %s29 = sphi 0, %s26
    %s30 = sphi 0, %s29
    %s46 = sphi 0, %s30
    %s50 = sphi 0, %s50
    %s52 = sphi 0, %s50
    %s53 = sphi 0, %s52
    %s67 = sphi 0, %s53
    %s71 = sphi 0, %s71
    %s73 = sphi 0, %s71
    %s74 = sphi 0, %s73
    %s88 = sphi 0, %s74
    %s92 = sphi 0, %s92
    %s94 = sphi 0, %s92
    %s95 = sphi 0, %s94
    %s109 = sphi 0, %s95
    %s113 = sphi 0, %s113
    %s115 = sphi 0, %s113
    %s116 = sphi 0, %s115
    %s130 = sphi 0, %s116
    %s134 = sphi 0, %s134
    %s136 = sphi 0, %s134
    %s137 = sphi 0, %s136
    %s151 = sphi 0, %s137
    %s155 = sphi 0, %s155
    %s157 = sphi 0, %s155
    %s158 = sphi 0, %s157
    %s172 = sphi 0, %s158
    %s176 = sphi 0, %s176
    %s178 = sphi 0, %s176
    %s179 = sphi 0, %s178
    %s193 = sphi 0, %s179
    %s197 = sphi 0, %s197
    %s199 = sphi 0, %s197
    %s200 = sphi 0, %s199
    %s214 = sphi 0, %s200
    %s220 = sphi 0, %s222
    %s223 = sphi 0, %s220
    %s224 = sphi 0, %s223
    %s240 = sphi 0, %s224
  $region4: #{attention_module_pallas.1} parent=0 // loop_header_branch
    %19 = sbr.rel (%p17) target = $region8
  $region5: #{attention_module_pallas.1} parent=0 // loop_body
    %s21 = ssub.s32 %s16, 1
    %s22 = ssub.s32 %s16, 2
    %s23 = sadd.s32 %s16, 1
    %s24 = ssub.s32 %s16, %s23
    %p25 = scmp.eq.s32.totalorder %s24, 0
    %s27 = sadd.s32 %s26, 1
    %s28 = scalar_select %p25, %s26, %s27
    %p31 = pneg %p25
    %p32 = scmp.eq.s32.totalorder %s16, 1
    %p33 = por %p31, %p32
    %p34 = scmp.ne.s32.totalorder %s26, %s29
    %p35 = scmp.eq.s32.totalorder %s16, 0
    %p36 = por %p34, %p35
    %p37 = scmp.ne.s32.totalorder %s26, %s29
    %p38 = scmp.eq.s32.totalorder %s21, 1
    %p39 = por %p37, %p38
    %p40 = scmp.ne.s32.totalorder %s29, %s30
    %p41 = scmp.eq.s32.totalorder %s21, 0
    %p42 = por %p40, %p41
    %p43 = scmp.ne.s32.totalorder %s29, %s30
    %p44 = scmp.eq.s32.totalorder %s22, 1
    %p45 = por %p43, %p44
    %p47 = scmp.ne.s32.totalorder %s30, %s46
    %p48 = scmp.eq.s32.totalorder %s22, 0
    %p49 = por %p47, %p48
    %s51 = sadd.s32 %s50, 1
    %p54 = scmp.eq.s32.totalorder %s16, 1
    %p55 = scmp.ne.s32.totalorder %s50, %s52
    %p56 = scmp.eq.s32.totalorder %s16, 0
    %p57 = por %p55, %p56
    %p58 = scmp.ne.s32.totalorder %s50, %s52
    %p59 = scmp.eq.s32.totalorder %s21, 1
    %p60 = por %p58, %p59
    %p61 = scmp.ne.s32.totalorder %s52, %s53
    %p62 = scmp.eq.s32.totalorder %s21, 0
    %p63 = por %p61, %p62
    %p64 = scmp.ne.s32.totalorder %s52, %s53
    %p65 = scmp.eq.s32.totalorder %s22, 1
    %p66 = por %p64, %p65
    %p68 = scmp.ne.s32.totalorder %s53, %s67
    %p69 = scmp.eq.s32.totalorder %s22, 0
    %p70 = por %p68, %p69
    %s72 = sadd.s32 %s71, 1
    %p75 = scmp.eq.s32.totalorder %s16, 1
    %p76 = scmp.ne.s32.totalorder %s71, %s73
    %p77 = scmp.eq.s32.totalorder %s16, 0
    %p78 = por %p76, %p77
    %p79 = scmp.ne.s32.totalorder %s71, %s73
    %p80 = scmp.eq.s32.totalorder %s21, 1
    %p81 = por %p79, %p80
    %p82 = scmp.ne.s32.totalorder %s73, %s74
    %p83 = scmp.eq.s32.totalorder %s21, 0
    %p84 = por %p82, %p83
    %p85 = scmp.ne.s32.totalorder %s73, %s74
    %p86 = scmp.eq.s32.totalorder %s22, 1
    %p87 = por %p85, %p86
    %p89 = scmp.ne.s32.totalorder %s74, %s88
    %p90 = scmp.eq.s32.totalorder %s22, 0
    %p91 = por %p89, %p90
    %s93 = sadd.s32 %s92, 1
    %p96 = scmp.eq.s32.totalorder %s16, 1
    %p97 = scmp.ne.s32.totalorder %s92, %s94
    %p98 = scmp.eq.s32.totalorder %s16, 0
    %p99 = por %p97, %p98
    %p100 = scmp.ne.s32.totalorder %s92, %s94
    %p101 = scmp.eq.s32.totalorder %s21, 1
    %p102 = por %p100, %p101
    %p103 = scmp.ne.s32.totalorder %s94, %s95
    %p104 = scmp.eq.s32.totalorder %s21, 0
    %p105 = por %p103, %p104
    %p106 = scmp.ne.s32.totalorder %s94, %s95
    %p107 = scmp.eq.s32.totalorder %s22, 1
    %p108 = por %p106, %p107
    %p110 = scmp.ne.s32.totalorder %s95, %s109
    %p111 = scmp.eq.s32.totalorder %s22, 0
    %p112 = por %p110, %p111
    %s114 = sadd.s32 %s113, 1
    %p117 = scmp.eq.s32.totalorder %s16, 1
    %p118 = scmp.ne.s32.totalorder %s113, %s115
    %p119 = scmp.eq.s32.totalorder %s16, 0
    %p120 = por %p118, %p119
    %p121 = scmp.ne.s32.totalorder %s113, %s115
    %p122 = scmp.eq.s32.totalorder %s21, 1
    %p123 = por %p121, %p122
    %p124 = scmp.ne.s32.totalorder %s115, %s116
    %p125 = scmp.eq.s32.totalorder %s21, 0
    %p126 = por %p124, %p125
    %p127 = scmp.ne.s32.totalorder %s115, %s116
    %p128 = scmp.eq.s32.totalorder %s22, 1
    %p129 = por %p127, %p128
    %p131 = scmp.ne.s32.totalorder %s116, %s130
    %p132 = scmp.eq.s32.totalorder %s22, 0
    %p133 = por %p131, %p132
    %s135 = sadd.s32 %s134, 1
    %p138 = scmp.eq.s32.totalorder %s16, 1
    %p139 = scmp.ne.s32.totalorder %s134, %s136
    %p140 = scmp.eq.s32.totalorder %s16, 0
    %p141 = por %p139, %p140
    %p142 = scmp.ne.s32.totalorder %s134, %s136
    %p143 = scmp.eq.s32.totalorder %s21, 1
    %p144 = por %p142, %p143
    %p145 = scmp.ne.s32.totalorder %s136, %s137
    %p146 = scmp.eq.s32.totalorder %s21, 0
    %p147 = por %p145, %p146
    %p148 = scmp.ne.s32.totalorder %s136, %s137
    %p149 = scmp.eq.s32.totalorder %s22, 1
    %p150 = por %p148, %p149
    %p152 = scmp.ne.s32.totalorder %s137, %s151
    %p153 = scmp.eq.s32.totalorder %s22, 0
    %p154 = por %p152, %p153
    %s156 = sadd.s32 %s155, 1
    %p159 = scmp.eq.s32.totalorder %s16, 1
    %p160 = scmp.ne.s32.totalorder %s155, %s157
    %p161 = scmp.eq.s32.totalorder %s16, 0
    %p162 = por %p160, %p161
    %p163 = scmp.ne.s32.totalorder %s155, %s157
    %p164 = scmp.eq.s32.totalorder %s21, 1
    %p165 = por %p163, %p164
    %p166 = scmp.ne.s32.totalorder %s157, %s158
    %p167 = scmp.eq.s32.totalorder %s21, 0
    %p168 = por %p166, %p167
    %p169 = scmp.ne.s32.totalorder %s157, %s158
    %p170 = scmp.eq.s32.totalorder %s22, 1
    %p171 = por %p169, %p170
    %p173 = scmp.ne.s32.totalorder %s158, %s172
    %p174 = scmp.eq.s32.totalorder %s22, 0
    %p175 = por %p173, %p174
    %s177 = sadd.s32 %s176, 1
    %p180 = scmp.eq.s32.totalorder %s16, 1
    %p181 = scmp.ne.s32.totalorder %s176, %s178
    %p182 = scmp.eq.s32.totalorder %s16, 0
    %p183 = por %p181, %p182
    %p184 = scmp.ne.s32.totalorder %s176, %s178
    %p185 = scmp.eq.s32.totalorder %s21, 1
    %p186 = por %p184, %p185
    %p187 = scmp.ne.s32.totalorder %s178, %s179
    %p188 = scmp.eq.s32.totalorder %s21, 0
    %p189 = por %p187, %p188
    %p190 = scmp.ne.s32.totalorder %s178, %s179
    %p191 = scmp.eq.s32.totalorder %s22, 1
    %p192 = por %p190, %p191
    %p194 = scmp.ne.s32.totalorder %s179, %s193
    %p195 = scmp.eq.s32.totalorder %s22, 0
    %p196 = por %p194, %p195
    %s198 = sadd.s32 %s197, 1
    %p201 = scmp.eq.s32.totalorder %s16, 1
    %p202 = scmp.ne.s32.totalorder %s197, %s199
    %p203 = scmp.eq.s32.totalorder %s16, 0
    %p204 = por %p202, %p203
    %p205 = scmp.ne.s32.totalorder %s197, %s199
    %p206 = scmp.eq.s32.totalorder %s21, 1
    %p207 = por %p205, %p206
    %p208 = scmp.ne.s32.totalorder %s199, %s200
    %p209 = scmp.eq.s32.totalorder %s21, 0
    %p210 = por %p208, %p209
    %p211 = scmp.ne.s32.totalorder %s199, %s200
    %p212 = scmp.eq.s32.totalorder %s22, 1
    %p213 = por %p211, %p212
    %p215 = scmp.ne.s32.totalorder %s200, %s214
    %p216 = scmp.eq.s32.totalorder %s22, 0
    %p217 = por %p215, %p216
    %s218 = ssub.s32 %s16, %s23
    %p219 = scmp.eq.s32.totalorder %s218, 0
    %s221 = sadd.s32 %s220, 1
    %s222 = scalar_select %p219, %s220, %s221
    %p225 = pneg %p219
    %p226 = scmp.eq.s32.totalorder %s16, 1
    %p227 = por %p225, %p226
    %p228 = scmp.ne.s32.totalorder %s220, %s223
    %p229 = scmp.eq.s32.totalorder %s16, 0
    %p230 = por %p228, %p229
    %p231 = scmp.ne.s32.totalorder %s220, %s223
    %p232 = scmp.eq.s32.totalorder %s21, 1
    %p233 = por %p231, %p232
    %p234 = scmp.ne.s32.totalorder %s223, %s224
    %p235 = scmp.eq.s32.totalorder %s21, 0
    %p236 = por %p234, %p235
    %p237 = scmp.ne.s32.totalorder %s223, %s224
    %p238 = scmp.eq.s32.totalorder %s22, 1
    %p239 = por %p237, %p238
    %p241 = scmp.ne.s32.totalorder %s224, %s240
    %p242 = scmp.eq.s32.totalorder %s22, 0
    %p243 = por %p241, %p242
    %p244 = scmp.le.s32.totalorder 1, %s16
    %p245 = scmp.lt.s32.totalorder %s16, 3
    %p246 = pnand %p244, %p245
    %p247 = pneg %p246
    // Predicated region
    $region9: #{attention_module_pallas.1} parent=5 // pred_check
      _
    $region10: #{attention_module_pallas.1} parent=5 // pred_check_branch
      %249 = sbr.rel (%p246) target = $region12
    $region11: #{attention_module_pallas.1} parent=5 // pred_region
      %s250 = ssub.s32 %s16, 1
      // Predicated region
      $region13: #{attention_module_pallas.1} parent=11 // pred_check
        %p251 = pneg %p63
      $region14: #{attention_module_pallas.1} parent=11 // pred_check_branch
        %253 = sbr.rel (%p251) target = $region16
      $region15: #{attention_module_pallas.1} parent=11 // pred_region
        _
      $region16: #{attention_module_pallas.1} parent=11 // pred_fallthru
        _
      // Predicated region
      $region17: #{attention_module_pallas.1} parent=11 // pred_check
        %p254 = pneg %p84
      $region18: #{attention_module_pallas.1} parent=11 // pred_check_branch
        %256 = sbr.rel (%p254) target = $region20
      $region19: #{attention_module_pallas.1} parent=11 // pred_region
        _
      $region20: #{attention_module_pallas.1} parent=11 // pred_fallthru
        _
      // Predicated region
      $region21: #{attention_module_pallas.1} parent=11 // pred_check
        %p257 = pneg %p105
      $region22: #{attention_module_pallas.1} parent=11 // pred_check_branch
        %259 = sbr.rel (%p257) target = $region24
      $region23: #{attention_module_pallas.1} parent=11 // pred_region
        _
      $region24: #{attention_module_pallas.1} parent=11 // pred_fallthru
        _
      // Predicated region
      $region25: #{attention_module_pallas.1} parent=11 // pred_check
        %p260 = pneg %p126
      $region26: #{attention_module_pallas.1} parent=11 // pred_check_branch
        %262 = sbr.rel (%p260) target = $region28
      $region27: #{attention_module_pallas.1} parent=11 // pred_region
        _
      $region28: #{attention_module_pallas.1} parent=11 // pred_fallthru
        _
      // Predicated region
      $region29: #{attention_module_pallas.1} parent=11 // pred_check
        %p263 = pneg %p147
      $region30: #{attention_module_pallas.1} parent=11 // pred_check_branch
        %265 = sbr.rel (%p263) target = $region32
      $region31: #{attention_module_pallas.1} parent=11 // pred_region
        _
      $region32: #{attention_module_pallas.1} parent=11 // pred_fallthru
        _
      // Predicated region
      $region33: #{attention_module_pallas.1} parent=11 // pred_check
        %p266 = pneg %p168
      $region34: #{attention_module_pallas.1} parent=11 // pred_check_branch
        %268 = sbr.rel (%p266) target = $region36
      $region35: #{attention_module_pallas.1} parent=11 // pred_region
        _
      $region36: #{attention_module_pallas.1} parent=11 // pred_fallthru
        _
      // Predicated region
      $region37: #{attention_module_pallas.1} parent=11 // pred_check
        %p269 = pneg %p189
      $region38: #{attention_module_pallas.1} parent=11 // pred_check_branch
        %271 = sbr.rel (%p269) target = $region40
      $region39: #{attention_module_pallas.1} parent=11 // pred_region
        _
      $region40: #{attention_module_pallas.1} parent=11 // pred_fallthru
        _
      // Predicated region
      $region41: #{attention_module_pallas.1} parent=11 // pred_check
        %p272 = pneg %p210
      $region42: #{attention_module_pallas.1} parent=11 // pred_check_branch
        %274 = sbr.rel (%p272) target = $region44
      $region43: #{attention_module_pallas.1} parent=11 // pred_region
        _
      $region44: #{attention_module_pallas.1} parent=11 // pred_fallthru
        _
    $region12: #{attention_module_pallas.1} parent=5 // pred_fallthru
      _
    %p275 = scmp.lt.s32.totalorder %s16, 2
    // Predicated region
    $region45: #{attention_module_pallas.1} parent=5 // pred_check
      %p276 = pneg %p275
    $region46: #{attention_module_pallas.1} parent=5 // pred_check_branch
      %278 = sbr.rel (%p276) target = $region48
    $region47: #{attention_module_pallas.1} parent=5 // pred_region
      // Predicated region
      $region49: #{attention_module_pallas.1} parent=47 // pred_check
        %p279 = pneg %p36
      $region50: #{attention_module_pallas.1} parent=47 // pred_check_branch
        %281 = sbr.rel (%p279) target = $region52
      $region51: #{attention_module_pallas.1} parent=47 // pred_region
        %p282 = scmp.lt.s32.totalorder %s16, 1
        %s283 = scalar_select %p282, %s16, 1
        %s284 = smul.addr %s283, 8
        %s285 = smul.addr %s284, 8
        %s286 = scalar_lea.vmem %s0, %s285
      $region52: #{attention_module_pallas.1} parent=47 // pred_fallthru
        _
    $region48: #{attention_module_pallas.1} parent=5 // pred_fallthru
      _
    %p287 = scmp.le.s32.totalorder 1, %s16
    %p288 = scmp.lt.s32.totalorder %s16, 3
    %p289 = pnand %p287, %p288
    %p290 = pneg %p289
    // Predicated region
    $region53: #{attention_module_pallas.1} parent=5 // pred_check
      _
    $region54: #{attention_module_pallas.1} parent=5 // pred_check_branch
      %292 = sbr.rel (%p289) target = $region56
    $region55: #{attention_module_pallas.1} parent=5 // pred_region
      %s293 = ssub.s32 %s16, 1
      %p294 = scmp.lt.s32.totalorder %s21, 1
      %s295 = scalar_select %p294, %s21, 1
      %s296 = smul.addr %s295, 8
      %s297 = smul.addr %s296, 8
      %s298 = scalar_lea.vmem %s0, %s297
      %p299 = pneg %p42
      %p300 = pneg %p39
      %p301 = pneg %p63
      %p302 = pneg %p60
      %p303 = pneg %p84
      %p304 = pneg %p81
      %p305 = pneg %p105
      %p306 = pneg %p102
      %p307 = pneg %p126
      %p308 = pneg %p123
      %p309 = pneg %p147
      %p310 = pneg %p144
      %p311 = pneg %p168
      %p312 = pneg %p165
      %p313 = pneg %p189
      %p314 = pneg %p186
      %p315 = pneg %p210
      %p316 = pneg %p207
      %p317 = pneg %p236
      %p318 = pneg %p233
      %p319 = scmp.lt.s32.totalorder %s21, 1
      %s320 = scalar_select %p319, %s21, 1
      %s321 = smul.addr %s320, 8
      %s322 = smul.addr %s321, 8
      %s323 = scalar_lea.vmem %s9, %s322
      %p324 = scmp.lt.s32.totalorder %s21, 1
      %s325 = scalar_select %p324, %s21, 1
      %s326 = smul.addr %s325, 8
      %s327 = smul.addr %s326, 8
      %s328 = scalar_lea.vmem %s0, %s327
      %p329 = scmp.lt.s32.totalorder %s21, 1
      %s330 = scalar_select %p329, %s21, 1
      %s331 = smul.addr %s330, 8
      %s332 = smul.addr %s331, 8
      %s333 = scalar_lea.vmem %s9, %s332
      %v334 = vld [vmem:[%s328] sm:$0xff]
      %v335 = vld [vmem:[%s328 + $0x8] sm:$0xff]
      %v336 = vld [vmem:[%s328 + $0x10] sm:$0xff]
      %v337 = vld [vmem:[%s328 + $0x18] sm:$0xff]
      %v338 = vld [vmem:[%s328 + $0x20] sm:$0xff]
      %v339 = vld [vmem:[%s328 + $0x28] sm:$0xff]
      %v340 = vld [vmem:[%s328 + $0x30] sm:$0xff]
      %v341 = vld [vmem:[%s328 + $0x38] sm:$0xff]
      %v342 = vld [vmem:[%s1] sm:$0xf]
      %v343 = vld [vmem:[%s2] sm:$0xf]
      %345 = vset.pattern.permute.xlu0 0
      %346 = vperm.xlu0 %345, %v343
      %v347 = vpop.permute.xlu0 %346
      %vm349 = vcmask 261120
      %v351 = vsel %vm349, %v342, 0
      %353 = vmatprep.subr.mxu0 %v335
      %354 = vmatpush1.msra.mxu0 %v334
      %355 = vmatprep.subr.mxu0 %v337
      %356 = vmatpush1.msra.mxu0 %v336
      %357 = vmatprep.subr.mxu0 %v339
      %358 = vmatpush1.msra.mxu0 %v338
      %359 = vmatprep.subr.mxu0 %v341
      %360 = vmatpush1.msra.mxu0 %v340
      %361 = vmatprep.subr.mxu0 0.0
      %362 = vmatpush1.msra.mxu0 0.0
      %363 = vmatprep.subr.mxu0 0.0
      %364 = vmatpush1.msra.mxu0 0.0
      %365 = vmatprep.subr.mxu0 0.0
      %366 = vmatpush1.msra.mxu0 0.0
      %367 = vmatprep.subr.mxu0 0.0
      %368 = vmatpush1.msra.mxu0 0.0
      %369 = vmatprep.subr.mxu0 0.0
      %370 = vmatpush1.msra.mxu0 0.0
      %371 = vmatprep.subr.mxu0 0.0
      %372 = vmatpush1.msra.mxu0 0.0
      %373 = vmatprep.subr.mxu0 0.0
      %374 = vmatpush1.msra.mxu0 0.0
      %375 = vmatprep.subr.mxu0 0.0
      %376 = vmatpush1.msra.mxu0 0.0
      %377 = vmatprep.subr.mxu0 0.0
      %378 = vmatpush1.msra.mxu0 0.0
      %379 = vmatprep.subr.mxu0 0.0
      %380 = vmatpush1.msra.mxu0 0.0
      %381 = vmatprep.subr.mxu0 0.0
      %382 = vmatpush1.msra.mxu0 0.0
      %383 = vmatprep.subr.mxu0 0.0
      %384 = vmatpush1.msra.mxu0 0.0
      %385 = vmatprep.subr.mxu0 0.0
      %386 = vmatpush1.msra.mxu0 0.0
      %387 = vmatprep.subr.mxu0 0.0
      %388 = vmatpush1.msra.mxu0 0.0
      %389 = vmatprep.subr.mxu0 0.0
      %390 = vmatpush1.msra.mxu0 0.0
      %391 = vmatprep.subr.mxu0 0.0
      %392 = vmatpush1.msra.mxu0 0.0
      %393 = vmatprep.subr.mxu0 0.0
      %394 = vmatpush1.msra.mxu0 0.0
      %395 = vmatprep.subr.mxu0 0.0
      %396 = vmatpush1.msra.mxu0 0.0
      %397 = vmatprep.subr.mxu0 0.0
      %398 = vmatpush1.msra.mxu0 0.0
      %399 = vmatprep.subr.mxu0 0.0
      %400 = vmatpush1.msra.mxu0 0.0
      %401 = vmatprep.subr.mxu0 0.0
      %402 = vmatpush1.msra.mxu0 0.0
      %403 = vmatprep.subr.mxu0 0.0
      %404 = vmatpush1.msra.mxu0 0.0
      %405 = vmatprep.subr.mxu0 0.0
      %406 = vmatpush1.msra.mxu0 0.0
      %407 = vmatprep.subr.mxu0 0.0
      %408 = vmatpush1.msra.mxu0 0.0
      %409 = vmatprep.subr.mxu0 0.0
      %410 = vmatpush1.msra.mxu0 0.0
      %411 = vmatprep.subr.mxu0 0.0
      %412 = vmatpush1.msra.mxu0 0.0
      %413 = vmatprep.subr.mxu0 0.0
      %414 = vmatpush1.msra.mxu0 0.0
      %415 = vmatprep.subr.mxu0 0.0
      %416 = vmatpush1.msra.mxu0 0.0
      %417 = vmatprep.mubr.f32.mxu0 0.0
      %418 = vmatmul.mubr.f32.gmra.mrb[0].mxu0 %v351
      %v419 = vpop.f32.mrb[0].mxu0
      %v420 = vadd.f32 %v347, %v419
      %v421 = vpop.f32.mrb[0].mxu0
      %v422 = vadd.f32 %v347, %v421
      %423 = vdwg.mxu0
      %v424 = vmax.f32 %v420, 0.0
      %v425 = vmax.f32 %v422, 0.0
      %v426 = vld [vmem:[%s3] sm:$0xf]
      %428 = vset.pattern.permute.xlu0 0
      %429 = vperm.xlu0 %428, %v426
      %v430 = vpop.permute.xlu0 %429
      %v432 = vmul.f32 %v424, %v430
      %v433 = vmul.f32 %v425, %v430
      %vm434 = vcmask 1043456
      %v435 = vsel %vm434, %v432, 0.0
      %v436 = vrot.slane %v435, 4
      %v437 = vadd.f32 %v435, %v436
      %v438 = vrot.slane %v437, 2
      %v439 = vadd.f32 %v437, %v438
      %v440 = vrot.slane %v439, 1
      %v441 = vadd.f32 %v439, %v440
      %v442 = vsel %vm434, %v433, 0.0
      %v443 = vrot.slane %v442, 4
      %v444 = vadd.f32 %v442, %v443
      %v445 = vrot.slane %v444, 2
      %v446 = vadd.f32 %v444, %v445
      %v447 = vrot.slane %v446, 1
      %v448 = vadd.f32 %v446, %v447
      %s449 = sld [smem:[#allocation2]]
      %v450 = vstv %s449
      %v451 = vadd.f32 %v441, %v450
      %v452 = vadd.f32 %v448, %v450
      %v453 = vsub.f32 0.0, %v451
      %v454 = vsub.f32 0.0, %v452
      %v455 = vmul.f32 %v453, 1.442695
      %v456 = vpow.pop %v455
      %v457 = vmul.f32 %v454, 1.442695
      %v458 = vpow.pop %v457
      %v459 = vadd.f32 %v456, 1.0
      %v460 = vadd.f32 %v458, 1.0
      %v461 = vrcp.pop %v459
      %v462 = vrcp.pop %v460
      %v463 = vadd.f32 %v334, %v335
      %464 = vadd.xlane.f32.xlu0 %v463
      %v465 = vpop.xlane.xlu0 %464
      %v466 = vadd.f32 %v336, %v337
      %467 = vadd.xlane.f32.xlu0 %v466
      %v468 = vpop.xlane.xlu0 %467
      %v469 = vadd.f32 %v338, %v339
      %470 = vadd.xlane.f32.xlu0 %v469
      %v471 = vpop.xlane.xlu0 %470
      %v472 = vadd.f32 %v340, %v341
      %473 = vadd.xlane.f32.xlu0 %v472
      %v474 = vpop.xlane.xlu0 %473
      %v475 = vrcp.pop 256.0
      %v476 = vmul.f32 %v465, %v475
      %v477 = vmul.f32 %v468, %v475
      %v478 = vmul.f32 %v471, %v475
      %v479 = vmul.f32 %v474, %v475
      %v480 = vld [vmem:[%s5] sm:$0xf]
      %v481 = vld [vmem:[%s6] sm:$0xf]
      %v483 = vsel %vm349, %v480, 0
      %485 = vmatprep.subr.mxu0 0.0
      %486 = vmatpush1.msra.mxu0 %v476
      %487 = vmatprep.subr.mxu0 0.0
      %488 = vmatpush1.msra.mxu0 %v477
      %489 = vmatprep.subr.mxu0 0.0
      %490 = vmatpush1.msra.mxu0 %v478
      %491 = vmatprep.subr.mxu0 0.0
      %492 = vmatpush1.msra.mxu0 %v479
      %493 = vmatprep.subr.mxu0 0.0
      %494 = vmatpush1.msra.mxu0 0.0
      %495 = vmatprep.subr.mxu0 0.0
      %496 = vmatpush1.msra.mxu0 0.0
      %497 = vmatprep.subr.mxu0 0.0
      %498 = vmatpush1.msra.mxu0 0.0
      %499 = vmatprep.subr.mxu0 0.0
      %500 = vmatpush1.msra.mxu0 0.0
      %501 = vmatprep.subr.mxu0 0.0
      %502 = vmatpush1.msra.mxu0 0.0
      %503 = vmatprep.subr.mxu0 0.0
      %504 = vmatpush1.msra.mxu0 0.0
      %505 = vmatprep.subr.mxu0 0.0
      %506 = vmatpush1.msra.mxu0 0.0
      %507 = vmatprep.subr.mxu0 0.0
      %508 = vmatpush1.msra.mxu0 0.0
      %509 = vmatprep.subr.mxu0 0.0
      %510 = vmatpush1.msra.mxu0 0.0
      %511 = vmatprep.subr.mxu0 0.0
      %512 = vmatpush1.msra.mxu0 0.0
      %513 = vmatprep.subr.mxu0 0.0
      %514 = vmatpush1.msra.mxu0 0.0
      %515 = vmatprep.subr.mxu0 0.0
      %516 = vmatpush1.msra.mxu0 0.0
      %517 = vmatprep.subr.mxu0 0.0
      %518 = vmatpush1.msra.mxu0 0.0
      %519 = vmatprep.subr.mxu0 0.0
      %520 = vmatpush1.msra.mxu0 0.0
      %521 = vmatprep.subr.mxu0 0.0
      %522 = vmatpush1.msra.mxu0 0.0
      %523 = vmatprep.subr.mxu0 0.0
      %524 = vmatpush1.msra.mxu0 0.0
      %525 = vmatprep.subr.mxu0 0.0
      %526 = vmatpush1.msra.mxu0 0.0
      %527 = vmatprep.subr.mxu0 0.0
      %528 = vmatpush1.msra.mxu0 0.0
      %529 = vmatprep.subr.mxu0 0.0
      %530 = vmatpush1.msra.mxu0 0.0
      %531 = vmatprep.subr.mxu0 0.0
      %532 = vmatpush1.msra.mxu0 0.0
      %533 = vmatprep.subr.mxu0 0.0
      %534 = vmatpush1.msra.mxu0 0.0
      %535 = vmatprep.subr.mxu0 0.0
      %536 = vmatpush1.msra.mxu0 0.0
      %537 = vmatprep.subr.mxu0 0.0
      %538 = vmatpush1.msra.mxu0 0.0
      %539 = vmatprep.subr.mxu0 0.0
      %540 = vmatpush1.msra.mxu0 0.0
      %541 = vmatprep.subr.mxu0 0.0
      %542 = vmatpush1.msra.mxu0 0.0
      %543 = vmatprep.subr.mxu0 0.0
      %544 = vmatpush1.msra.mxu0 0.0
      %545 = vmatprep.subr.mxu0 0.0
      %546 = vmatpush1.msra.mxu0 0.0
      %547 = vmatprep.subr.mxu0 0.0
      %548 = vmatpush1.msra.mxu0 0.0
      %549 = vmatprep.mubr.f32.mxu0 0.0
      %550 = vmatmul.mubr.f32.gmra.mrb[0].mxu0 %v483
      %v551 = vpop.f32.mrb[0].mxu0
      %v552 = vadd.f32 %v481, %v551
      %v553 = vpop.f32.mrb[0].mxu0
      %554 = vdwg.mxu0
      %v555 = vmax.f32 %v552, 0.0
      %v556 = vld [vmem:[%s7] sm:$0xff]
      %v557 = vld [vmem:[%s7 + $0x8] sm:$0xff]
      %v558 = vld [vmem:[%s7 + $0x10] sm:$0xff]
      %v559 = vld [vmem:[%s7 + $0x18] sm:$0xff]
      %v560 = vld [vmem:[%s8] sm:$0xff]
      %v561 = vld [vmem:[%s8 + $0x8] sm:$0xff]
      %v562 = vld [vmem:[%s8 + $0x10] sm:$0xff]
      %v563 = vld [vmem:[%s8 + $0x18] sm:$0xff]
      %vm564 = vcmask 31744
      %v566 = vsel %vm564, %v556, 0
      %v569 = vsel %vm564, %v557, 0
      %v572 = vsel %vm564, %v558, 0
      %v575 = vsel %vm564, %v559, 0
      %v578 = vsel %vm434, %v555, 0
      %580 = vmatprep.subr.mxu0 0.0
      %581 = vmatpush1.msra.mxu0 %v578
      %582 = vmatprep.subr.mxu0 0.0
      %583 = vmatpush1.msra.mxu0 0.0
      %584 = vmatprep.subr.mxu0 0.0
      %585 = vmatpush1.msra.mxu0 0.0
      %586 = vmatprep.subr.mxu0 0.0
      %587 = vmatpush1.msra.mxu0 0.0
      %588 = vmatprep.subr.mxu0 0.0
      %589 = vmatpush1.msra.mxu0 0.0
      %590 = vmatprep.subr.mxu0 0.0
      %591 = vmatpush1.msra.mxu0 0.0
      %592 = vmatprep.subr.mxu0 0.0
      %593 = vmatpush1.msra.mxu0 0.0
      %594 = vmatprep.subr.mxu0 0.0
      %595 = vmatpush1.msra.mxu0 0.0
      %596 = vmatprep.subr.mxu0 0.0
      %597 = vmatpush1.msra.mxu0 0.0
      %598 = vmatprep.subr.mxu0 0.0
      %599 = vmatpush1.msra.mxu0 0.0
      %600 = vmatprep.subr.mxu0 0.0
      %601 = vmatpush1.msra.mxu0 0.0
      %602 = vmatprep.subr.mxu0 0.0
      %603 = vmatpush1.msra.mxu0 0.0
      %604 = vmatprep.subr.mxu0 0.0
      %605 = vmatpush1.msra.mxu0 0.0
      %606 = vmatprep.subr.mxu0 0.0
      %607 = vmatpush1.msra.mxu0 0.0
      %608 = vmatprep.subr.mxu0 0.0
      %609 = vmatpush1.msra.mxu0 0.0
      %610 = vmatprep.subr.mxu0 0.0
      %611 = vmatpush1.msra.mxu0 0.0
      %612 = vmatprep.subr.mxu0 0.0
      %613 = vmatpush1.msra.mxu0 0.0
      %614 = vmatprep.subr.mxu0 0.0
      %615 = vmatpush1.msra.mxu0 0.0
      %616 = vmatprep.subr.mxu0 0.0
      %617 = vmatpush1.msra.mxu0 0.0
      %618 = vmatprep.subr.mxu0 0.0
      %619 = vmatpush1.msra.mxu0 0.0
      %620 = vmatprep.subr.mxu0 0.0
      %621 = vmatpush1.msra.mxu0 0.0
      %622 = vmatprep.subr.mxu0 0.0
      %623 = vmatpush1.msra.mxu0 0.0
      %624 = vmatprep.subr.mxu0 0.0
      %625 = vmatpush1.msra.mxu0 0.0
      %626 = vmatprep.subr.mxu0 0.0
      %627 = vmatpush1.msra.mxu0 0.0
      %628 = vmatprep.subr.mxu0 0.0
      %629 = vmatpush1.msra.mxu0 0.0
      %630 = vmatprep.subr.mxu0 0.0
      %631 = vmatpush1.msra.mxu0 0.0
      %632 = vmatprep.subr.mxu0 0.0
      %633 = vmatpush1.msra.mxu0 0.0
      %634 = vmatprep.subr.mxu0 0.0
      %635 = vmatpush1.msra.mxu0 0.0
      %636 = vmatprep.subr.mxu0 0.0
      %637 = vmatpush1.msra.mxu0 0.0
      %638 = vmatprep.subr.mxu0 0.0
      %639 = vmatpush1.msra.mxu0 0.0
      %640 = vmatprep.subr.mxu0 0.0
      %641 = vmatpush1.msra.mxu0 0.0
      %642 = vmatprep.subr.mxu0 0.0
      %643 = vmatpush1.msra.mxu0 0.0
      %644 = vmatprep.mubr.f32.mxu0 0.0
      %645 = vmatmul.mubr.f32.gmra.mrb[0].mxu0 %v566
      %v646 = vpop.f32.mrb[0].mxu0
      %v647 = vadd.f32 %v560, %v646
      %v648 = vpop.f32.mrb[0].mxu0
      %649 = vmatprep.mubr.f32.mxu0 0.0
      %650 = vmatmul.mubr.f32.gmra.mrb[0].mxu0 %v569
      %v651 = vpop.f32.mrb[0].mxu0
      %v652 = vadd.f32 %v561, %v651
      %v653 = vpop.f32.mrb[0].mxu0
      %654 = vmatprep.mubr.f32.mxu0 0.0
      %655 = vmatmul.mubr.f32.gmra.mrb[0].mxu0 %v572
      %v656 = vpop.f32.mrb[0].mxu0
      %v657 = vadd.f32 %v562, %v656
      %v658 = vpop.f32.mrb[0].mxu0
      %659 = vmatprep.mubr.f32.mxu0 0.0
      %660 = vmatmul.mubr.f32.gmra.mrb[0].mxu0 %v575
      %v661 = vpop.f32.mrb[0].mxu0
      %v662 = vadd.f32 %v563, %v661
      %v663 = vpop.f32.mrb[0].mxu0
      %664 = vdwg.mxu0
      %v665 = vsub.f32 0.0, %v647
      %v666 = vsub.f32 0.0, %v652
      %v667 = vsub.f32 0.0, %v657
      %v668 = vsub.f32 0.0, %v662
      %v669 = vmul.f32 %v665, 1.442695
      %v670 = vpow.pop %v669
      %v671 = vmul.f32 %v666, 1.442695
      %v672 = vpow.pop %v671
      %v673 = vmul.f32 %v667, 1.442695
      %v674 = vpow.pop %v673
      %v675 = vmul.f32 %v668, 1.442695
      %v676 = vpow.pop %v675
      %v677 = vadd.f32 %v670, 1.0
      %v678 = vadd.f32 %v672, 1.0
      %v679 = vadd.f32 %v674, 1.0
      %v680 = vadd.f32 %v676, 1.0
      %v681 = vrcp.pop %v677
      %v682 = vrcp.pop %v678
      %v683 = vrcp.pop %v679
      %v684 = vrcp.pop %v680
      %v685 = vmul.f32 %v334, %v461
      %v686 = vmul.f32 %v335, %v462
      %v687 = vmul.f32 %v336, %v461
      %v688 = vmul.f32 %v337, %v462
      %v689 = vmul.f32 %v338, %v461
      %v690 = vmul.f32 %v339, %v462
      %v691 = vmul.f32 %v340, %v461
      %v692 = vmul.f32 %v341, %v462
      %694 = vset.pattern.permute.xlu0 0
      %695 = vperm.xlu0 %694, %v681
      %v696 = vpop.permute.xlu0 %695
      %699 = vset.pattern.permute.xlu0 0
      %700 = vperm.xlu0 %699, %v682
      %v701 = vpop.permute.xlu0 %700
      %704 = vset.pattern.permute.xlu0 0
      %705 = vperm.xlu0 %704, %v683
      %v706 = vpop.permute.xlu0 %705
      %709 = vset.pattern.permute.xlu0 0
      %710 = vperm.xlu0 %709, %v684
      %v711 = vpop.permute.xlu0 %710
      %v713 = vmul.f32 %v685, %v696
      %v714 = vmul.f32 %v686, %v696
      %v715 = vmul.f32 %v687, %v701
      %v716 = vmul.f32 %v688, %v701
      %v717 = vmul.f32 %v689, %v706
      %v718 = vmul.f32 %v690, %v706
      %v719 = vmul.f32 %v691, %v711
      %v720 = vmul.f32 %v692, %v711
      %721 = vst [vmem:[%s333] sm:$0xff] %v713
      %722 = vst [vmem:[%s333 + $0x8] sm:$0xff] %v714
      %723 = vst [vmem:[%s333 + $0x10] sm:$0xff] %v715
      %724 = vst [vmem:[%s333 + $0x18] sm:$0xff] %v716
      %725 = vst [vmem:[%s333 + $0x20] sm:$0xff] %v717
      %726 = vst [vmem:[%s333 + $0x28] sm:$0xff] %v718
      %727 = vst [vmem:[%s333 + $0x30] sm:$0xff] %v719
      %728 = vst [vmem:[%s333 + $0x38] sm:$0xff] %v720
      %p729 = scmp.lt.s32.totalorder %s21, 1
      %s730 = scalar_select %p729, %s21, 1
      %s731 = smul.addr %s730, 8
      %s732 = smul.addr %s731, 8
      %s733 = scalar_lea.vmem %s9, %s732
      // Predicated region
      $region57: #{attention_module_pallas.1} parent=55 // pred_check
        %p734 = pneg %p233
      $region58: #{attention_module_pallas.1} parent=55 // pred_check_branch
        %736 = sbr.rel (%p734) target = $region60
      $region59: #{attention_module_pallas.1} parent=55 // pred_region
        _
      $region60: #{attention_module_pallas.1} parent=55 // pred_fallthru
        _
    $region56: #{attention_module_pallas.1} parent=5 // pred_fallthru
      _
    %p737 = scmp.le.s32.totalorder 2, %s16
    // Predicated region
    $region61: #{attention_module_pallas.1} parent=5 // pred_check
      %p738 = pneg %p737
    $region62: #{attention_module_pallas.1} parent=5 // pred_check_branch
      %740 = sbr.rel (%p738) target = $region64
    $region63: #{attention_module_pallas.1} parent=5 // pred_region
      %s741 = ssub.s32 %s16, 2
      // Predicated region
      $region65: #{attention_module_pallas.1} parent=63 // pred_check
        %p742 = pneg %p239
      $region66: #{attention_module_pallas.1} parent=63 // pred_check_branch
        %744 = sbr.rel (%p742) target = $region68
      $region67: #{attention_module_pallas.1} parent=63 // pred_region
        %p745 = scmp.lt.s32.totalorder %s22, 1
        %s746 = scalar_select %p745, %s22, 1
        %s747 = smul.addr %s746, 8
        %s748 = smul.addr %s747, 8
        %s749 = scalar_lea.vmem %s9, %s748
      $region68: #{attention_module_pallas.1} parent=63 // pred_fallthru
        _
    $region64: #{attention_module_pallas.1} parent=5 // pred_fallthru
      _
  $region6: #{attention_module_pallas.1} parent=0 // loop_footer
    %s20 = sadd.s32 1, %s16
  $region7: #{attention_module_pallas.1} parent=0 // loop_footer_branch
    %15 = sbr.rel target = $region3
  $region8: #{attention_module_pallas.1} parent=0 // loop_exit
    _

</llo_original>
